<compile_context>
chip_gen: v7x
topology: tpu7x:2x2x1
jax: 0.10.0
libtpu: 0.0.40
codegen_flags: <defaults>
</compile_context>

<pallas_src>
import functools
import numpy as np
import jax
import jax.numpy as jnp
from jax.experimental import pallas as pl
from jax.experimental.pallas import tpu as pltpu


def _sigmoid(x):
    # tanh lives on the EUP (otherwise idle here); avoids a VALU divide sequence.
    return 0.5 * jnp.tanh(0.5 * x) + 0.5


def treelstm_kernel(num_levels, use_edge_gate,
                    node_level_ref, edge_level_ref, g_ref, pt_ref,
                    wx_ref, wfx_ref, uiou_t_ref, uf_t_ref,
                    h_out_ref,
                    c_sc, hc_sc, scat_sc):
    Fp = h_out_ref.shape[1]

    # h state lives in the output block; c in scratch. Both start at zero.
    h_out_ref[...] = jnp.zeros_like(h_out_ref)
    c_sc[...] = jnp.zeros_like(c_sc)

    node_level = node_level_ref[...]            # (Np, 1) int32, resident
    if use_edge_gate:
        edge_level = edge_level_ref[...]        # (Ep, 1) int32, resident

    @pl.loop(0, num_levels)
    def _level(level):
        h = h_out_ref[...]                      # (Np, Fp) f32, resident state
        c = c_sc[...]                           # (Np, Fp) f32

        # Stage [h | c] as bf16 so the child gather is one (Ep,Np)@(Np,2Fp) matmul.
        hc_sc[:, :Fp] = h.astype(jnp.bfloat16)
        hc_sc[:, Fp:] = c.astype(jnp.bfloat16)
        child_hc = jnp.dot(g_ref[...], hc_sc[...],
                           preferred_element_type=jnp.float32)         # (Ep, 2Fp)
        if use_edge_gate:
            # Only needed when edge_order != node_order[parent] for some edge.
            child_hc = jnp.where(edge_level == level, child_hc, 0.0)
        child_h = child_hc[:, :Fp]
        child_c = child_hc[:, Fp:]

        # Forget gate per edge. Off-level edges compute garbage rows, but those only
        # feed off-level parents whose rows are discarded by the node mask below.
        f = _sigmoid(wfx_ref[...] +
                     jnp.dot(child_h.astype(jnp.bfloat16), uf_t_ref[...],
                             preferred_element_type=jnp.float32))       # (Ep, Fp)

        # Batched segment-sum scatter: one (Np,Ep)@(Ep,2Fp) matmul -> [h_sum | c_sum].
        scat_sc[:, :Fp] = child_h.astype(jnp.bfloat16)
        scat_sc[:, Fp:] = (f * child_c).astype(jnp.bfloat16)
        sums = jnp.dot(pt_ref[...], scat_sc[...],
                       preferred_element_type=jnp.float32)              # (Np, 2Fp)
        h_sum = sums[:, :Fp]
        c_sum = sums[:, Fp:]

        iou = wx_ref[...] + jnp.dot(h_sum.astype(jnp.bfloat16), uiou_t_ref[...],
                                    preferred_element_type=jnp.float32)  # (Np, 3Fp)
        i_g = _sigmoid(iou[:, 0:Fp])
        o_g = _sigmoid(iou[:, Fp:2 * Fp])
        u_g = jnp.tanh(iou[:, 2 * Fp:3 * Fp])

        c_cand = i_g * u_g + c_sum
        h_cand = o_g * jnp.tanh(c_cand)

        # Masked commit back into the resident state (single vsel each).
        upd = node_level == level
        c_sc[...] = jnp.where(upd, c_cand, c)
        h_out_ref[...] = jnp.where(upd, h_cand, h)


def _pad_gate_cols(arr, F, Fp, n_gates, rows_pad):
    """(R, n_gates*F) -> (rows_pad, n_gates*Fp): gate block g starts at column g*Fp."""
    arr = np.asarray(arr, np.float32)
    R = arr.shape[0]
    out = np.zeros((rows_pad, n_gates * Fp), np.float32)
    for g in range(n_gates):
        out[:R, g * Fp:g * Fp + F] = arr[:, g * F:(g + 1) * F]
    return out


def _vmem_limit_bytes():
    cap = 64 * 1024 * 1024                          # conservative (v7x) default
    try:
        cap = int(pltpu.get_tpu_info().vmem_capacity_bytes)
    except Exception:
        pass
    # Leave ~8 MiB headroom under the physical cap; ~100 MiB ceiling on 128 MiB parts.
    return int(min(cap - 8 * 1024 * 1024, 100 * 1024 * 1024))


def tree_lstm_forward(features, node_order, adjacency_list, edge_order, params):
    W_iou, b_iou, U_iou, W_f, b_f, U_f = [np.asarray(p, np.float32) for p in params]
    features = np.asarray(features, np.float32)
    node_order = np.asarray(node_order, np.int32)
    adjacency_list = np.asarray(adjacency_list, np.int32)
    edge_order = np.asarray(edge_order, np.int32)

    N, F = features.shape
    E = adjacency_list.shape[0]
    L = int(node_order.max()) + 1                   # number of levels (static)

    # Pad N/E to sublane multiples (8) and F to a lane-tile multiple (128) so all gate
    # slices are lane-aligned and stores are unmasked.
    pad8 = lambda v: max(8, -(-v // 8) * 8)
    Np_ = pad8(N)
    Ep_ = pad8(E)
    Fp = max(128, -(-F // 128) * 128)

    parent = adjacency_list[:, 0]
    child = adjacency_list[:, 1]

    # If every edge's level equals its parent's level (the standard level schedule),
    # the in-kernel per-edge level gate is redundant and is compiled out.
    use_edge_gate = not bool(np.all(edge_order == node_order[parent]))

    # Loop-invariant precomputes hoisted out of the kernel (f32).
    # TODO(synk): for large trees compute these on-device with jnp instead of numpy.
    wx = features @ W_iou.T + b_iou                 # (N, 3F)  W_iou(x) per node
    wfx = features[parent] @ W_f.T + b_f            # (E, F)   W_f(x[parent]) per edge

    # One-hot gather / segment-sum matrices (exact 0/1 in bf16).
    G = np.zeros((Ep_, Np_), np.float32)
    G[np.arange(E), child] = 1.0                    # child gather
    Pt = np.zeros((Np_, Ep_), np.float32)
    Pt[parent, np.arange(E)] = 1.0                  # parent scatter / segment sum

    node_level = np.full((Np_, 1), -1, np.int32)    # -1: padded rows never commit
    node_level[:N, 0] = node_order
    edge_level = np.full((Ep_, 1), -1, np.int32)
    edge_level[:E, 0] = edge_order

    DT = jnp.bfloat16
    args = (
        jnp.asarray(node_level), jnp.asarray(edge_level),
        jnp.asarray(G, DT), jnp.asarray(Pt, DT),
        jnp.asarray(_pad_gate_cols(wx, F, Fp, 3, Np_)),            # f32 precompute
        jnp.asarray(_pad_gate_cols(wfx, F, Fp, 1, Ep_)),           # f32 precompute
        jnp.asarray(_pad_gate_cols(U_iou.T, F, Fp, 3, Fp), DT),    # U_iou^T gate-blocked
        jnp.asarray(_pad_gate_cols(U_f.T, F, Fp, 1, Fp), DT),      # U_f^T
    )

    kernel = functools.partial(treelstm_kernel, L, use_edge_gate)
    out = pl.pallas_call(
        kernel,
        out_shape=jax.ShapeDtypeStruct((Np_, Fp), jnp.float32),
        in_specs=[pl.BlockSpec(memory_space=pltpu.MemorySpace.VMEM)] * len(args),
        out_specs=pl.BlockSpec(memory_space=pltpu.MemorySpace.VMEM),
        scratch_shapes=[
            pltpu.VMEM((Np_, Fp), jnp.float32),         # c state
            pltpu.VMEM((Np_, 2 * Fp), jnp.bfloat16),    # [h|c] gather staging
            pltpu.VMEM((Ep_, 2 * Fp), jnp.bfloat16),    # [child_h|f*child_c] staging
        ],
        compiler_params=pltpu.CompilerParams(
            vmem_limit_bytes=_vmem_limit_bytes(),
        ),
    )(*args)
    return out[:N, :F]


def reference_numpy(features, node_order, adjacency_list, edge_order, params):
    """Faithful numpy port of the PyTorch forward (masked gather / split / scatter)."""
    W_iou, b_iou, U_iou, W_f, b_f, U_f = [np.asarray(p, np.float64) for p in params]
    features = np.asarray(features, np.float64)
    node_order = np.asarray(node_order)
    adjacency_list = np.asarray(adjacency_list)
    edge_order = np.asarray(edge_order)
    N, F = features.shape
    h = np.zeros((N, F), np.float64)
    c = np.zeros((N, F), np.float64)
    sig = lambda z: 1.0 / (1.0 + np.exp(-z))
    for n in range(int(node_order.max()) + 1):
        node_mask = node_order == n
        edge_mask = edge_order == n
        x = features[node_mask]
        if n == 0:
            iou = x @ W_iou.T + b_iou
        else:
            adj = adjacency_list[edge_mask]
            parent, child = adj[:, 0], adj[:, 1]
            child_h, child_c = h[child], c[child]
            counts = []
            prev = None
            for p in parent:
                if prev is None or p != prev:
                    counts.append(1)
                    prev = p
                else:
                    counts[-1] += 1
            off, hs = 0, []
            for cnt in counts:
                hs.append(child_h[off:off + cnt].sum(0)); off += cnt
            h_sum = np.stack(hs)
            iou = x @ W_iou.T + b_iou + h_sum @ U_iou.T
        i_, o_, u_ = np.split(iou, 3, axis=1)
        i_, o_, u_ = sig(i_), sig(o_), np.tanh(u_)
        if n == 0:
            c[node_mask] = i_ * u_
        else:
            f = sig(features[parent] @ W_f.T + b_f + child_h @ U_f.T)
            fc = f * child_c
            off, cs = 0, []
            for cnt in counts:
                cs.append(fc[off:off + cnt].sum(0)); off += cnt
            c[node_mask] = i_ * u_ + np.stack(cs)
        h[node_mask] = o_ * np.tanh(c[node_mask])
    return h


if __name__ == "__main__":
    in_features = 32

    # Complete binary tree with 15 nodes: node i has children 2i+1, 2i+2.
    N = 15
    node_order = np.zeros(N, dtype=np.int32)
    for i in reversed(range(N)):
        l, r = 2 * i + 1, 2 * i + 2
        if l < N:
            node_order[i] = max(node_order[l], node_order[r]) + 1
    adj = []
    for p in range(N):
        for ch in (2 * p + 1, 2 * p + 2):
            if ch < N:
                adj.append((p, ch))
    adjacency_list = np.array(adj, dtype=np.int32)          # (14, 2), grouped by parent
    edge_order = node_order[adjacency_list[:, 0]].astype(np.int32)

    # Deterministic parameters / inputs (nn.Linear-style uniform init).
    key = jax.random.PRNGKey(0)
    ks = jax.random.split(key, 7)
    bound = 1.0 / np.sqrt(in_features)
    W_iou = jax.random.uniform(ks[0], (3 * in_features, in_features), jnp.float32, -bound, bound)
    b_iou = jax.random.uniform(ks[1], (3 * in_features,), jnp.float32, -bound, bound)
    U_iou = jax.random.uniform(ks[2], (3 * in_features, in_features), jnp.float32, -bound, bound)
    W_f = jax.random.uniform(ks[3], (in_features, in_features), jnp.float32, -bound, bound)
    b_f = jax.random.uniform(ks[4], (in_features,), jnp.float32, -bound, bound)
    U_f = jax.random.uniform(ks[5], (in_features, in_features), jnp.float32, -bound, bound)
    features = jax.random.normal(ks[6], (N, in_features), jnp.float32)
    params = (W_iou, b_iou, U_iou, W_f, b_f, U_f)

    h_out = tree_lstm_forward(features, node_order, adjacency_list, edge_order, params)
    h_out = jax.block_until_ready(h_out)

    h_ref = reference_numpy(features, node_order, adjacency_list, edge_order, params)
    # Loose tolerance: bf16 MXU operands (f32 accumulation) vs. float64 numpy reference.
    np.testing.assert_allclose(np.asarray(h_out), h_ref, atol=3e-2, rtol=3e-2)

    print("KERNEL_OK")
</pallas_src>

<mosaic_0001>
module attributes {stable_mosaic.version = 11 : i64} {
  func.func @treelstm_kernel(%arg0: memref<16x1xi32, #tpu.memory_space<vmem>>, %arg1: memref<16x1xi32, #tpu.memory_space<vmem>>, %arg2: memref<16x16xbf16, #tpu.memory_space<vmem>>, %arg3: memref<16x16xbf16, #tpu.memory_space<vmem>>, %arg4: memref<16x384xf32, #tpu.memory_space<vmem>>, %arg5: memref<16x128xf32, #tpu.memory_space<vmem>>, %arg6: memref<128x384xbf16, #tpu.memory_space<vmem>>, %arg7: memref<128x128xbf16, #tpu.memory_space<vmem>>, %arg8: memref<16x128xf32, #tpu.memory_space<vmem>>, %arg9: memref<16x128xf32, #tpu.memory_space<vmem>>, %arg10: memref<16x256xbf16, #tpu.memory_space<vmem>>, %arg11: memref<16x256xbf16, #tpu.memory_space<vmem>>) attributes {dimension_semantics = [], scalar_prefetch = 0 : i64, scratch_operands = 3 : i64, tpu.core_type = #tpu.core_type<tc>} {
    %cst = arith.constant 0.000000e+00 : f32
    %0 = vector.broadcast %cst : f32 to vector<16x128xf32>
    %c0 = arith.constant 0 : index
    %c0_0 = arith.constant 0 : index
    %1 = vector.load %arg8[%c0, %c0_0] : memref<16x128xf32, #tpu.memory_space<vmem>>, vector<16x128xf32>
    tpu.vector_store %arg8[%c0, %c0_0], %0 {strides = array<i32>} : memref<16x128xf32, #tpu.memory_space<vmem>>, vector<16x128xf32>,
    %cst_1 = arith.constant 0.000000e+00 : f32
    %2 = vector.broadcast %cst_1 : f32 to vector<16x128xf32>
    %c0_2 = arith.constant 0 : index
    %c0_3 = arith.constant 0 : index
    %3 = vector.load %arg9[%c0_2, %c0_3] : memref<16x128xf32, #tpu.memory_space<vmem>>, vector<16x128xf32>
    tpu.vector_store %arg9[%c0_2, %c0_3], %2 {strides = array<i32>} : memref<16x128xf32, #tpu.memory_space<vmem>>, vector<16x128xf32>,
    %c0_4 = arith.constant 0 : index
    %c0_5 = arith.constant 0 : index
    %4 = vector.load %arg0[%c0_4, %c0_5] : memref<16x1xi32, #tpu.memory_space<vmem>>, vector<16x1xi32>
    %c0_i32 = arith.constant 0 : i32
    %c4_i32 = arith.constant 4 : i32
    %5 = arith.addi %c0_i32, %c4_i32 : i32
    %c1_i32 = arith.constant 1 : i32
    scf.for %arg12 = %c0_i32 to %5 step %c1_i32  : i32 {
      %c1_i32_7 = arith.constant 1 : i32
      %6 = arith.muli %arg12, %c1_i32_7 : i32
      %c0_i32_8 = arith.constant 0 : i32
      %7 = arith.addi %c0_i32_8, %6 : i32
      %c0_9 = arith.constant 0 : index
      %c0_10 = arith.constant 0 : index
      %8 = vector.load %arg8[%c0_9, %c0_10] : memref<16x128xf32, #tpu.memory_space<vmem>>, vector<16x128xf32>
      %c0_11 = arith.constant 0 : index
      %c0_12 = arith.constant 0 : index
      %9 = vector.load %arg9[%c0_11, %c0_12] : memref<16x128xf32, #tpu.memory_space<vmem>>, vector<16x128xf32>
      %10 = arith.truncf %8 : vector<16x128xf32> to vector<16x128xbf16>
      %c0_13 = arith.constant 0 : index
      %c0_14 = arith.constant 0 : index
      %11 = vector.load %arg10[%c0_13, %c0_14] : memref<16x256xbf16, #tpu.memory_space<vmem>>, vector<16x128xbf16>
      tpu.vector_store %arg10[%c0_13, %c0_14], %10 {strides = array<i32>} : memref<16x256xbf16, #tpu.memory_space<vmem>>, vector<16x128xbf16>,
      %12 = arith.truncf %9 : vector<16x128xf32> to vector<16x128xbf16>
      %c0_15 = arith.constant 0 : index
      %c128 = arith.constant 128 : index
      %13 = vector.load %arg10[%c0_15, %c128] : memref<16x256xbf16, #tpu.memory_space<vmem>>, vector<16x128xbf16>
      tpu.vector_store %arg10[%c0_15, %c128], %12 {strides = array<i32>} : memref<16x256xbf16, #tpu.memory_space<vmem>>, vector<16x128xbf16>,
      %c0_16 = arith.constant 0 : index
      %c0_17 = arith.constant 0 : index
      %14 = vector.load %arg2[%c0_16, %c0_17] : memref<16x16xbf16, #tpu.memory_space<vmem>>, vector<16x16xbf16>
      %c0_18 = arith.constant 0 : index
      %c0_19 = arith.constant 0 : index
      %15 = vector.load %arg10[%c0_18, %c0_19] : memref<16x256xbf16, #tpu.memory_space<vmem>>, vector<16x256xbf16>
      %cst_20 = arith.constant dense<0.000000e+00> : vector<16x256xf32>
      %16 = tpu.matmul %14, %15, %cst_20 {dimension_numbers = #tpu.dot_dimension_numbers<[1], [0], [0], [1], [0, 0, 1, 1], [], []>} : vector<16x16xbf16>, vector<16x256xbf16>, vector<16x256xf32> -> vector<16x256xf32>
      %17 = vector.extract_strided_slice %16 {offsets = [0, 0], sizes = [16, 128], strides = [1, 1]} : vector<16x256xf32> to vector<16x128xf32>
      %18 = vector.extract_strided_slice %16 {offsets = [0, 128], sizes = [16, 128], strides = [1, 1]} : vector<16x256xf32> to vector<16x128xf32>
      %c0_21 = arith.constant 0 : index
      %c0_22 = arith.constant 0 : index
      %19 = vector.load %arg5[%c0_21, %c0_22] : memref<16x128xf32, #tpu.memory_space<vmem>>, vector<16x128xf32>
      %20 = arith.truncf %17 : vector<16x128xf32> to vector<16x128xbf16>
      %c0_23 = arith.constant 0 : index
      %c0_24 = arith.constant 0 : index
      %21 = vector.load %arg7[%c0_23, %c0_24] : memref<128x128xbf16, #tpu.memory_space<vmem>>, vector<128x128xbf16>
      %cst_25 = arith.constant dense<0.000000e+00> : vector<16x128xf32>
      %22 = tpu.matmul %20, %21, %cst_25 {dimension_numbers = #tpu.dot_dimension_numbers<[1], [0], [0], [1], [0, 0, 1, 1], [], []>} : vector<16x128xbf16>, vector<128x128xbf16>, vector<16x128xf32> -> vector<16x128xf32>
      %23 = arith.addf %19, %22 : vector<16x128xf32>
      %cst_26 = arith.constant 5.000000e-01 : f32
      %24 = vector.broadcast %cst_26 : f32 to vector<16x128xf32>
      %25 = arith.mulf %24, %23 : vector<16x128xf32>
      %26 = math.tanh %25 : vector<16x128xf32>
      %cst_27 = arith.constant 5.000000e-01 : f32
      %27 = vector.broadcast %cst_27 : f32 to vector<16x128xf32>
      %28 = arith.mulf %27, %26 : vector<16x128xf32>
      %cst_28 = arith.constant 5.000000e-01 : f32
      %29 = vector.broadcast %cst_28 : f32 to vector<16x128xf32>
      %30 = arith.addf %28, %29 : vector<16x128xf32>
      %31 = arith.truncf %17 : vector<16x128xf32> to vector<16x128xbf16>
      %c0_29 = arith.constant 0 : index
      %c0_30 = arith.constant 0 : index
      %32 = vector.load %arg11[%c0_29, %c0_30] : memref<16x256xbf16, #tpu.memory_space<vmem>>, vector<16x128xbf16>
      tpu.vector_store %arg11[%c0_29, %c0_30], %31 {strides = array<i32>} : memref<16x256xbf16, #tpu.memory_space<vmem>>, vector<16x128xbf16>,
      %33 = arith.mulf %30, %18 : vector<16x128xf32>
      %34 = arith.truncf %33 : vector<16x128xf32> to vector<16x128xbf16>
      %c0_31 = arith.constant 0 : index
      %c128_32 = arith.constant 128 : index
      %35 = vector.load %arg11[%c0_31, %c128_32] : memref<16x256xbf16, #tpu.memory_space<vmem>>, vector<16x128xbf16>
      tpu.vector_store %arg11[%c0_31, %c128_32], %34 {strides = array<i32>} : memref<16x256xbf16, #tpu.memory_space<vmem>>, vector<16x128xbf16>,
      %c0_33 = arith.constant 0 : index
      %c0_34 = arith.constant 0 : index
      %36 = vector.load %arg3[%c0_33, %c0_34] : memref<16x16xbf16, #tpu.memory_space<vmem>>, vector<16x16xbf16>
      %c0_35 = arith.constant 0 : index
      %c0_36 = arith.constant 0 : index
      %37 = vector.load %arg11[%c0_35, %c0_36] : memref<16x256xbf16, #tpu.memory_space<vmem>>, vector<16x256xbf16>
      %cst_37 = arith.constant dense<0.000000e+00> : vector<16x256xf32>
      %38 = tpu.matmul %36, %37, %cst_37 {dimension_numbers = #tpu.dot_dimension_numbers<[1], [0], [0], [1], [0, 0, 1, 1], [], []>} : vector<16x16xbf16>, vector<16x256xbf16>, vector<16x256xf32> -> vector<16x256xf32>
      %39 = vector.extract_strided_slice %38 {offsets = [0, 0], sizes = [16, 128], strides = [1, 1]} : vector<16x256xf32> to vector<16x128xf32>
      %40 = vector.extract_strided_slice %38 {offsets = [0, 128], sizes = [16, 128], strides = [1, 1]} : vector<16x256xf32> to vector<16x128xf32>
      %c0_38 = arith.constant 0 : index
      %c0_39 = arith.constant 0 : index
      %41 = vector.load %arg4[%c0_38, %c0_39] : memref<16x384xf32, #tpu.memory_space<vmem>>, vector<16x384xf32>
      %42 = arith.truncf %39 : vector<16x128xf32> to vector<16x128xbf16>
      %c0_40 = arith.constant 0 : index
      %c0_41 = arith.constant 0 : index
      %43 = vector.load %arg6[%c0_40, %c0_41] : memref<128x384xbf16, #tpu.memory_space<vmem>>, vector<128x384xbf16>
      %cst_42 = arith.constant dense<0.000000e+00> : vector<16x384xf32>
      %44 = tpu.matmul %42, %43, %cst_42 {dimension_numbers = #tpu.dot_dimension_numbers<[1], [0], [0], [1], [0, 0, 1, 1], [], []>} : vector<16x128xbf16>, vector<128x384xbf16>, vector<16x384xf32> -> vector<16x384xf32>
      %45 = arith.addf %41, %44 : vector<16x384xf32>
      %46 = vector.extract_strided_slice %45 {offsets = [0, 0], sizes = [16, 128], strides = [1, 1]} : vector<16x384xf32> to vector<16x128xf32>
      %cst_43 = arith.constant 5.000000e-01 : f32
      %47 = vector.broadcast %cst_43 : f32 to vector<16x128xf32>
      %48 = arith.mulf %47, %46 : vector<16x128xf32>
      %49 = math.tanh %48 : vector<16x128xf32>
      %cst_44 = arith.constant 5.000000e-01 : f32
      %50 = vector.broadcast %cst_44 : f32 to vector<16x128xf32>
      %51 = arith.mulf %50, %49 : vector<16x128xf32>
      %cst_45 = arith.constant 5.000000e-01 : f32
      %52 = vector.broadcast %cst_45 : f32 to vector<16x128xf32>
      %53 = arith.addf %51, %52 : vector<16x128xf32>
      %54 = vector.extract_strided_slice %45 {offsets = [0, 128], sizes = [16, 128], strides = [1, 1]} : vector<16x384xf32> to vector<16x128xf32>
      %cst_46 = arith.constant 5.000000e-01 : f32
      %55 = vector.broadcast %cst_46 : f32 to vector<16x128xf32>
      %56 = arith.mulf %55, %54 : vector<16x128xf32>
      %57 = math.tanh %56 : vector<16x128xf32>
      %cst_47 = arith.constant 5.000000e-01 : f32
      %58 = vector.broadcast %cst_47 : f32 to vector<16x128xf32>
      %59 = arith.mulf %58, %57 : vector<16x128xf32>
      %cst_48 = arith.constant 5.000000e-01 : f32
      %60 = vector.broadcast %cst_48 : f32 to vector<16x128xf32>
      %61 = arith.addf %59, %60 : vector<16x128xf32>
      %62 = vector.extract_strided_slice %45 {offsets = [0, 256], sizes = [16, 128], strides = [1, 1]} : vector<16x384xf32> to vector<16x128xf32>
      %63 = math.tanh %62 : vector<16x128xf32>
      %64 = arith.mulf %53, %63 : vector<16x128xf32>
      %65 = arith.addf %64, %40 : vector<16x128xf32>
      %66 = math.tanh %65 : vector<16x128xf32>
      %67 = arith.mulf %61, %66 : vector<16x128xf32>
      %68 = vector.broadcast %7 : i32 to vector<16x1xi32>
      %69 = arith.cmpi eq, %4, %68 : vector<16x1xi32>
      %70 = vector.shape_cast %69 : vector<16x1xi1> to vector<16x1xi1>
      %71 = vector.broadcast %70 : vector<16x1xi1> to vector<16x128xi1>
      %72 = arith.select %71, %65, %9 : vector<16x128xi1>, vector<16x128xf32>
      %c0_49 = arith.constant 0 : index
      %c0_50 = arith.constant 0 : index
      %73 = vector.load %arg9[%c0_49, %c0_50] : memref<16x128xf32, #tpu.memory_space<vmem>>, vector<16x128xf32>
      tpu.vector_store %arg9[%c0_49, %c0_50], %72 {strides = array<i32>} : memref<16x128xf32, #tpu.memory_space<vmem>>, vector<16x128xf32>,
      %74 = vector.shape_cast %69 : vector<16x1xi1> to vector<16x1xi1>
      %75 = vector.broadcast %74 : vector<16x1xi1> to vector<16x128xi1>
      %76 = arith.select %75, %67, %8 : vector<16x128xi1>, vector<16x128xf32>
      %c0_51 = arith.constant 0 : index
      %c0_52 = arith.constant 0 : index
      %77 = vector.load %arg8[%c0_51, %c0_52] : memref<16x128xf32, #tpu.memory_space<vmem>>, vector<16x128xf32>
      tpu.vector_store %arg8[%c0_51, %c0_52], %76 {strides = array<i32>} : memref<16x128xf32, #tpu.memory_space<vmem>>, vector<16x128xf32>,
    }
    %c4_i32_6 = arith.constant 4 : i32
    return
  }
}

</mosaic_0001>

<llo_original>
// kernel: tpu_custom_call.1
$region0: #{tpu_custom_call.1}
  #allocation0 [shape = 'u32[]', space=smem, size = 0x4, offset = 0x4, fixed_abs, tag = 'smem constant byte address 0x4 - core index']
  #allocation1 [shape = 'u32[144,128]{1,0:T(1,128)}', space=vmem, size = 0x12000, scoped, tag = 'internal scratch']
  #allocation2 [shape = 'f32[16,128]{1,0:T(8,128)}', space=vmem, size = 0x2000, scoped, tag = 'scratch operand']
  #allocation3 [shape = 'bf16[16,256]{1,0:T(16,128)(2,1)}', space=vmem, size = 0x2000, scoped, tag = 'scratch operand']
  #allocation4 [shape = 'bf16[16,256]{1,0:T(16,128)(2,1)}', space=vmem, size = 0x2000, scoped, tag = 'scratch operand']
  %s0 = inlined_call_operand.vmem [shape: s32[16,1], index: 0, kind: input, shape index: {}]
  %s1 = inlined_call_operand.vmem [shape: s32[16,1], index: 1, kind: input, shape index: {}]
  %s2 = inlined_call_operand.hbm [shape: bf16[16,16], index: 2, kind: input, shape index: {}]
  %s3 = inlined_call_operand.hbm [shape: bf16[16,16], index: 3, kind: input, shape index: {}]
  %s4 = inlined_call_operand.vmem [shape: f32[16,384], index: 4, kind: input, shape index: {}]
  %s5 = inlined_call_operand.hbm [shape: f32[16,128], index: 5, kind: input, shape index: {}]
  %s6 = inlined_call_operand.hbm [shape: bf16[128,384], index: 6, kind: input, shape index: {}]
  %s7 = inlined_call_operand.hbm [shape: bf16[128,128], index: 7, kind: input, shape index: {}]
  %s8 = inlined_call_operand.hbm [shape: f32[16,128], index: 8, kind: output, shape index: {}]
  %s9 = sld [smem:[#allocation0]]
  $region69: #{tpu_custom_call.1} parent=0
    _
  %s11 = ssub.s32 1, %s9
  %s12 = scalar_select 0, %s11, %s9
  $region1: #{tpu_custom_call.1} parent=0
    #allocation5 [shape = 'u8[4096]{0}', space=vmem, size = 0x1000, scoped, tag = 'input window, operand 2, single buffered']
    #allocation6 [shape = 's32[1]{0}', space=sflag, size = 0x4, scoped, tag = 'scoped memory for tpu_custom_call.1']
    #allocation7 [shape = 's32[1]{0}', space=sflag, size = 0x4, scoped, tag = 'scoped memory for tpu_custom_call.1']
    #allocation8 [shape = 'u8[4096]{0}', space=vmem, size = 0x1000, scoped, tag = 'input window, operand 3, single buffered']
    #allocation9 [shape = 's32[1]{0}', space=sflag, size = 0x4, scoped, tag = 'scoped memory for tpu_custom_call.1']
    #allocation10 [shape = 'u8[8192]{0}', space=vmem, size = 0x2000, scoped, tag = 'input window, operand 5, single buffered']
    #allocation11 [shape = 'u8[98304]{0}', space=vmem, size = 0x18000, scoped, tag = 'input window, operand 6, single buffered']
    #allocation12 [shape = 's32[1]{0}', space=sflag, size = 0x4, scoped, tag = 'scoped memory for tpu_custom_call.1']
    #allocation13 [shape = 'u8[32768]{0}', space=vmem, size = 0x8000, scoped, tag = 'input window, operand 7, single buffered']
    #allocation14 [shape = 'u8[8192]{0}', space=vmem, size = 0x2000, scoped, tag = 'output window, operand 0, single buffered']
    %13 = vsyncpa [#allocation6], 0
    %14 = vsyncpa [#allocation9], 0
    %15 = vsyncpa [#allocation12], 0
    %16 = vsyncpa [#allocation7], 0
    // Predicated region
    $region2: #{tpu_custom_call.1} parent=1 // pred_check
      _
    $region3: #{tpu_custom_call.1} parent=1 // pred_check_branch
      %18 = sbr.rel (0) target = $region5
    $region4: #{tpu_custom_call.1} parent=1 // pred_region
      _
    $region5: #{tpu_custom_call.1} parent=1 // pred_fallthru
      _
    // Predicated region
    $region6: #{tpu_custom_call.1} parent=1 // pred_check
      _
    $region7: #{tpu_custom_call.1} parent=1 // pred_check_branch
      %20 = sbr.rel (0) target = $region9
    $region8: #{tpu_custom_call.1} parent=1 // pred_region
      _
    $region9: #{tpu_custom_call.1} parent=1 // pred_fallthru
      _
    // Predicated region
    $region10: #{tpu_custom_call.1} parent=1 // pred_check
      _
    $region11: #{tpu_custom_call.1} parent=1 // pred_check_branch
      %22 = sbr.rel (0) target = $region13
    $region12: #{tpu_custom_call.1} parent=1 // pred_region
      %s24 = ssub.s32 128, 128
      %25 = vsyncadd [#allocation6], %s24
      %s26 = sshll.u32 [#allocation5], 4
      %s27 = int_to_ptr.vmem [resolvable:$true] %s26
      %32 = dma.hbm_to_vmem [thread:$0]  %s2, 128, %s27, [#allocation6], 64, 64, 4
    $region13: #{tpu_custom_call.1} parent=1 // pred_fallthru
      _
    // Predicated region
    $region14: #{tpu_custom_call.1} parent=1 // pred_check
      _
    $region15: #{tpu_custom_call.1} parent=1 // pred_check_branch
      %34 = sbr.rel (0) target = $region17
    $region16: #{tpu_custom_call.1} parent=1 // pred_region
      %s36 = ssub.s32 128, 128
      %37 = vsyncadd [#allocation9], %s36
      %s38 = sshll.u32 [#allocation8], 4
      %s39 = int_to_ptr.vmem [resolvable:$true] %s38
      %44 = dma.hbm_to_vmem [thread:$0]  %s3, 128, %s39, [#allocation9], 64, 64, 4
    $region17: #{tpu_custom_call.1} parent=1 // pred_fallthru
      _
    // Predicated region
    $region18: #{tpu_custom_call.1} parent=1 // pred_check
      _
    $region19: #{tpu_custom_call.1} parent=1 // pred_check_branch
      %46 = sbr.rel (0) target = $region21
    $region20: #{tpu_custom_call.1} parent=1 // pred_region
      _
    $region21: #{tpu_custom_call.1} parent=1 // pred_fallthru
      _
    // Predicated region
    $region22: #{tpu_custom_call.1} parent=1 // pred_check
      _
    $region23: #{tpu_custom_call.1} parent=1 // pred_check_branch
      %48 = sbr.rel (0) target = $region25
    $region24: #{tpu_custom_call.1} parent=1 // pred_region
      %s50 = ssub.s32 256, 256
      %51 = vsyncadd [#allocation9], %s50
      %s52 = sshll.u32 [#allocation10], 4
      %s53 = int_to_ptr.vmem [resolvable:$true] %s52
      %58 = dma.hbm_to_vmem [thread:$0]  %s5, 256, %s53, [#allocation9], 128, 128, 8
    $region25: #{tpu_custom_call.1} parent=1 // pred_fallthru
      _
    // Predicated region
    $region26: #{tpu_custom_call.1} parent=1 // pred_check
      _
    $region27: #{tpu_custom_call.1} parent=1 // pred_check_branch
      %60 = sbr.rel (0) target = $region29
    $region28: #{tpu_custom_call.1} parent=1 // pred_region
      %s62 = ssub.s32 3072, 3072
      %63 = vsyncadd [#allocation12], %s62
      %s64 = sshll.u32 [#allocation11], 4
      %s65 = int_to_ptr.vmem [resolvable:$true] %s64
      %70 = dma.hbm_to_vmem [thread:$0]  %s6, 3072, %s65, [#allocation12], 192, 192, 12
    $region29: #{tpu_custom_call.1} parent=1 // pred_fallthru
      _
    // Predicated region
    $region30: #{tpu_custom_call.1} parent=1 // pred_check
      _
    $region31: #{tpu_custom_call.1} parent=1 // pred_check_branch
      %72 = sbr.rel (0) target = $region33
    $region32: #{tpu_custom_call.1} parent=1 // pred_region
      %s74 = ssub.s32 1024, 1024
      %75 = vsyncadd [#allocation12], %s74
      %s76 = sshll.u32 [#allocation13], 4
      %s77 = int_to_ptr.vmem [resolvable:$true] %s76
      %82 = dma.hbm_to_vmem [thread:$0]  %s7, 1024, %s77, [#allocation12], 64, 64, 4
    $region33: #{tpu_custom_call.1} parent=1 // pred_fallthru
      _
    // Predicated region
    $region34: #{tpu_custom_call.1} parent=1 // pred_check
      _
    $region35: #{tpu_custom_call.1} parent=1 // pred_check_branch
      %84 = sbr.rel (0) target = $region37
    $region36: #{tpu_custom_call.1} parent=1 // pred_region
      %85 = dma.done [#allocation6], 128
    $region37: #{tpu_custom_call.1} parent=1 // pred_fallthru
      _
    // Predicated region
    $region38: #{tpu_custom_call.1} parent=1 // pred_check
      _
    $region39: #{tpu_custom_call.1} parent=1 // pred_check_branch
      %87 = sbr.rel (0) target = $region41
    $region40: #{tpu_custom_call.1} parent=1 // pred_region
      %88 = dma.done [#allocation9], 128
    $region41: #{tpu_custom_call.1} parent=1 // pred_fallthru
      _
    // Predicated region
    $region42: #{tpu_custom_call.1} parent=1 // pred_check
      _
    $region43: #{tpu_custom_call.1} parent=1 // pred_check_branch
      %90 = sbr.rel (0) target = $region45
    $region44: #{tpu_custom_call.1} parent=1 // pred_region
      %91 = dma.done [#allocation9], 256
    $region45: #{tpu_custom_call.1} parent=1 // pred_fallthru
      _
    // Predicated region
    $region46: #{tpu_custom_call.1} parent=1 // pred_check
      _
    $region47: #{tpu_custom_call.1} parent=1 // pred_check_branch
      %93 = sbr.rel (0) target = $region49
    $region48: #{tpu_custom_call.1} parent=1 // pred_region
      %94 = dma.done [#allocation12], 3072
    $region49: #{tpu_custom_call.1} parent=1 // pred_fallthru
      _
    // Predicated region
    $region50: #{tpu_custom_call.1} parent=1 // pred_check
      _
    $region51: #{tpu_custom_call.1} parent=1 // pred_check_branch
      %96 = sbr.rel (0) target = $region53
    $region52: #{tpu_custom_call.1} parent=1 // pred_region
      %97 = dma.done [#allocation12], 1024
    $region53: #{tpu_custom_call.1} parent=1 // pred_fallthru
      _
    %99 = vst [vmem:[#allocation14] sm:$0xff] 0.0
    %100 = vst [vmem:[#allocation14 + $0x8] sm:$0xff] 0.0
    %101 = vst [vmem:[#allocation2] sm:$0xff] 0.0
    %102 = vst [vmem:[#allocation2 + $0x8] sm:$0xff] 0.0
    %v103 = vld [vmem:[%s0] sm:$0xff]
    %v104 = vld [vmem:[%s0 + $0x8] sm:$0xff]
    loop: start=0, step=1, limit=4
    $region54: #{tpu_custom_call.1} parent=1 // loop_pre_header
      _
    $region55: #{tpu_custom_call.1} parent=1 // loop_header
      %s106 = sphi 0, %s110
      %p107 = scmp.ge.s32.totalorder %s106, 4
    $region56: #{tpu_custom_call.1} parent=1 // loop_header_branch
      %109 = sbr.rel (%p107) target = $region60
    $region57: #{tpu_custom_call.1} parent=1 // loop_body
      %v111 = vld [vmem:[#allocation14] sm:$0xff]
      %v112 = vld [vmem:[#allocation14 + $0x8] sm:$0xff]
      %v113 = vld [vmem:[#allocation2] sm:$0xff]
      %v114 = vld [vmem:[#allocation2 + $0x8] sm:$0xff]
      %v115 = vpack.c.bf16 %v112, %v111
      %116 = vst [vmem:[#allocation3] sm:$0xff] %v115
      %v117 = vpack.c.bf16 %v114, %v113
      %118 = vst [vmem:[#allocation3 + $0x8] sm:$0xff] %v117
      %v119 = vld [vmem:[#allocation5] sm:$0xf]
      %v120 = vld [vmem:[#allocation5 + $0x4] sm:$0xf]
      %v121 = vld [vmem:[#allocation3] sm:$0xff]
      %v122 = vld [vmem:[#allocation3 + $0x8] sm:$0xff]
      %v125 = vunpack.c.l.b16 %v119
      %v126 = vunpack.c.l.b16 %v120
      %v127 = vpack.c.b16 %v126, %v125
      %vm128 = vcmask 130048
      %v130 = vsel %vm128, %v127, 0
      %132 = vmatprep.subr.bf16.mxu0 %v122
      %133 = vmatpush1.bf16.msra.mxu0 %v121
      %134 = vmatprep.subr.bf16.mxu0 0
      %135 = vmatpush1.bf16.msra.mxu0 0
      %136 = vmatprep.subr.bf16.mxu0 0
      %137 = vmatpush1.bf16.msra.mxu0 0
      %138 = vmatprep.subr.bf16.mxu0 0
      %139 = vmatpush1.bf16.msra.mxu0 0
      %140 = vmatprep.subr.bf16.mxu0 0
      %141 = vmatpush1.bf16.msra.mxu0 0
      %142 = vmatprep.subr.bf16.mxu0 0
      %143 = vmatpush1.bf16.msra.mxu0 0
      %144 = vmatprep.subr.bf16.mxu0 0
      %145 = vmatpush1.bf16.msra.mxu0 0
      %146 = vmatprep.subr.bf16.mxu0 0
      %147 = vmatpush1.bf16.msra.mxu0 0
      %148 = vmatprep.subr.bf16.mxu0 0
      %149 = vmatpush1.bf16.msra.mxu0 0
      %150 = vmatprep.subr.bf16.mxu0 0
      %151 = vmatpush1.bf16.msra.mxu0 0
      %152 = vmatprep.subr.bf16.mxu0 0
      %153 = vmatpush1.bf16.msra.mxu0 0
      %154 = vmatprep.subr.bf16.mxu0 0
      %155 = vmatpush1.bf16.msra.mxu0 0
      %156 = vmatprep.subr.bf16.mxu0 0
      %157 = vmatpush1.bf16.msra.mxu0 0
      %158 = vmatprep.subr.bf16.mxu0 0
      %159 = vmatpush1.bf16.msra.mxu0 0
      %160 = vmatprep.subr.bf16.mxu0 0
      %161 = vmatpush1.bf16.msra.mxu0 0
      %162 = vmatprep.subr.bf16.mxu0 0
      %163 = vmatpush1.bf16.msra.mxu0 0
      %164 = vmatprep.mubr.bf16.mxu0 0
      %165 = vmatmul.mubr.bf16.gmra.mrb[0].mxu0 %v130
      %v166 = vpop.f32.mrb[0].mxu0
      %v167 = vadd.f32 0.0, %v166
      %v168 = vpop.f32.mrb[0].mxu0
      %v169 = vadd.f32 0.0, %v168
      %v170 = vpop.f32.mrb[0].mxu0
      %v171 = vadd.f32 0.0, %v170
      %v172 = vpop.f32.mrb[0].mxu0
      %v173 = vadd.f32 0.0, %v172
      %174 = vdwg.mxu0
      %v175 = vld [vmem:[#allocation10] sm:$0xff]
      %v176 = vld [vmem:[#allocation10 + $0x8] sm:$0xff]
      %v177 = vpack.c.bf16 %v171, %v167
      %v178 = vld [vmem:[#allocation13] sm:$0xf]
      %v179 = vld [vmem:[#allocation13 + $0x4] sm:$0xf]
      %v180 = vld [vmem:[#allocation13 + $0x8] sm:$0xf]
      %v181 = vld [vmem:[#allocation13 + $0xc] sm:$0xf]
      %v182 = vld [vmem:[#allocation13 + $0x10] sm:$0xf]
      %v183 = vld [vmem:[#allocation13 + $0x14] sm:$0xf]
      %v184 = vld [vmem:[#allocation13 + $0x18] sm:$0xf]
      %v185 = vld [vmem:[#allocation13 + $0x1c] sm:$0xf]
      %v186 = vld [vmem:[#allocation13 + $0x20] sm:$0xf]
      %v187 = vld [vmem:[#allocation13 + $0x24] sm:$0xf]
      %v188 = vld [vmem:[#allocation13 + $0x28] sm:$0xf]
      %v189 = vld [vmem:[#allocation13 + $0x2c] sm:$0xf]
      %v190 = vld [vmem:[#allocation13 + $0x30] sm:$0xf]
      %v191 = vld [vmem:[#allocation13 + $0x34] sm:$0xf]
      %v192 = vld [vmem:[#allocation13 + $0x38] sm:$0xf]
      %v193 = vld [vmem:[#allocation13 + $0x3c] sm:$0xf]
      %v210 = vunpack.c.l.b16 %v178
      %v211 = vunpack.c.l.b16 %v179
      %v212 = vunpack.c.l.b16 %v180
      %v213 = vunpack.c.l.b16 %v181
      %v214 = vunpack.c.l.b16 %v182
      %v215 = vunpack.c.l.b16 %v183
      %v216 = vunpack.c.l.b16 %v184
      %v217 = vunpack.c.l.b16 %v185
      %v218 = vunpack.c.l.b16 %v186
      %v219 = vunpack.c.l.b16 %v187
      %v220 = vunpack.c.l.b16 %v188
      %v221 = vunpack.c.l.b16 %v189
      %v222 = vunpack.c.l.b16 %v190
      %v223 = vunpack.c.l.b16 %v191
      %v224 = vunpack.c.l.b16 %v192
      %v225 = vunpack.c.l.b16 %v193
      %v226 = vpack.c.b16 %v211, %v210
      %v227 = vpack.c.b16 %v213, %v212
      %v228 = vpack.c.b16 %v215, %v214
      %v229 = vpack.c.b16 %v217, %v216
      %v230 = vpack.c.b16 %v219, %v218
      %v231 = vpack.c.b16 %v221, %v220
      %v232 = vpack.c.b16 %v223, %v222
      %v233 = vpack.c.b16 %v225, %v224
      %242 = vmatprep.subr.bf16.mxu0 0
      %243 = vmatpush1.bf16.msra.mxu0 %v226
      %244 = vmatprep.subr.bf16.mxu0 0
      %245 = vmatpush1.bf16.msra.mxu0 %v227
      %246 = vmatprep.subr.bf16.mxu0 0
      %247 = vmatpush1.bf16.msra.mxu0 %v228
      %248 = vmatprep.subr.bf16.mxu0 0
      %249 = vmatpush1.bf16.msra.mxu0 %v229
      %250 = vmatprep.subr.bf16.mxu0 0
      %251 = vmatpush1.bf16.msra.mxu0 %v230
      %252 = vmatprep.subr.bf16.mxu0 0
      %253 = vmatpush1.bf16.msra.mxu0 %v231
      %254 = vmatprep.subr.bf16.mxu0 0
      %255 = vmatpush1.bf16.msra.mxu0 %v232
      %256 = vmatprep.subr.bf16.mxu0 0
      %257 = vmatpush1.bf16.msra.mxu0 %v233
      %258 = vmatprep.subr.bf16.mxu0 0
      %259 = vmatpush1.bf16.msra.mxu0 0
      %260 = vmatprep.subr.bf16.mxu0 0
      %261 = vmatpush1.bf16.msra.mxu0 0
      %262 = vmatprep.subr.bf16.mxu0 0
      %263 = vmatpush1.bf16.msra.mxu0 0
      %264 = vmatprep.subr.bf16.mxu0 0
      %265 = vmatpush1.bf16.msra.mxu0 0
      %266 = vmatprep.subr.bf16.mxu0 0
      %267 = vmatpush1.bf16.msra.mxu0 0
      %268 = vmatprep.subr.bf16.mxu0 0
      %269 = vmatpush1.bf16.msra.mxu0 0
      %270 = vmatprep.subr.bf16.mxu0 0
      %271 = vmatpush1.bf16.msra.mxu0 0
      %272 = vmatprep.subr.bf16.mxu0 0
      %273 = vmatpush1.bf16.msra.mxu0 0
      %274 = vmatprep.mubr.bf16.mxu0 0
      %275 = vmatmul.mubr.bf16.gmra.mrb[0].mxu0 %v177
      %v276 = vpop.f32.mrb[0].mxu0
      %v277 = vadd.f32 0.0, %v276
      %v278 = vpop.f32.mrb[0].mxu0
      %v279 = vpop.f32.mrb[0].mxu0
      %v280 = vadd.f32 0.0, %v279
      %v281 = vpop.f32.mrb[0].mxu0
      %282 = vdwg.mxu0
      %v283 = vadd.f32 %v175, %v277
      %v284 = vadd.f32 %v176, %v280
      %v285 = vmul.f32 %v283, 0.5
      %v286 = vmul.f32 %v284, 0.5
      %v287 = vtanh.pop %v285
      %v288 = vtanh.pop %v286
      %v289 = vmul.f32 %v287, 0.5
      %v290 = vmul.f32 %v288, 0.5
      %v291 = vadd.f32 %v289, 0.5
      %v292 = vadd.f32 %v290, 0.5
      %293 = vst [vmem:[#allocation4] sm:$0xff] %v177
      %v294 = vmul.f32 %v291, %v169
      %v295 = vmul.f32 %v292, %v173
      %v296 = vpack.c.bf16 %v295, %v294
      %297 = vst [vmem:[#allocation4 + $0x8] sm:$0xff] %v296
      %v298 = vld [vmem:[#allocation8] sm:$0xf]
      %v299 = vld [vmem:[#allocation8 + $0x4] sm:$0xf]
      %v300 = vld [vmem:[#allocation4] sm:$0xff]
      %v301 = vld [vmem:[#allocation4 + $0x8] sm:$0xff]
      %v304 = vunpack.c.l.b16 %v298
      %v305 = vunpack.c.l.b16 %v299
      %v306 = vpack.c.b16 %v305, %v304
      %v308 = vsel %vm128, %v306, 0
      %310 = vmatprep.subr.bf16.mxu0 %v301
      %311 = vmatpush1.bf16.msra.mxu0 %v300
      %312 = vmatprep.subr.bf16.mxu0 0
      %313 = vmatpush1.bf16.msra.mxu0 0
      %314 = vmatprep.subr.bf16.mxu0 0
      %315 = vmatpush1.bf16.msra.mxu0 0
      %316 = vmatprep.subr.bf16.mxu0 0
      %317 = vmatpush1.bf16.msra.mxu0 0
      %318 = vmatprep.subr.bf16.mxu0 0
      %319 = vmatpush1.bf16.msra.mxu0 0
      %320 = vmatprep.subr.bf16.mxu0 0
      %321 = vmatpush1.bf16.msra.mxu0 0
      %322 = vmatprep.subr.bf16.mxu0 0
      %323 = vmatpush1.bf16.msra.mxu0 0
      %324 = vmatprep.subr.bf16.mxu0 0
      %325 = vmatpush1.bf16.msra.mxu0 0
      %326 = vmatprep.subr.bf16.mxu0 0
      %327 = vmatpush1.bf16.msra.mxu0 0
      %328 = vmatprep.subr.bf16.mxu0 0
      %329 = vmatpush1.bf16.msra.mxu0 0
      %330 = vmatprep.subr.bf16.mxu0 0
      %331 = vmatpush1.bf16.msra.mxu0 0
      %332 = vmatprep.subr.bf16.mxu0 0
      %333 = vmatpush1.bf16.msra.mxu0 0
      %334 = vmatprep.subr.bf16.mxu0 0
      %335 = vmatpush1.bf16.msra.mxu0 0
      %336 = vmatprep.subr.bf16.mxu0 0
      %337 = vmatpush1.bf16.msra.mxu0 0
      %338 = vmatprep.subr.bf16.mxu0 0
      %339 = vmatpush1.bf16.msra.mxu0 0
      %340 = vmatprep.subr.bf16.mxu0 0
      %341 = vmatpush1.bf16.msra.mxu0 0
      %342 = vmatprep.mubr.bf16.mxu0 0
      %343 = vmatmul.mubr.bf16.gmra.mrb[0].mxu0 %v308
      %v344 = vpop.f32.mrb[0].mxu0
      %v345 = vadd.f32 0.0, %v344
      %v346 = vpop.f32.mrb[0].mxu0
      %v347 = vadd.f32 0.0, %v346
      %v348 = vpop.f32.mrb[0].mxu0
      %v349 = vadd.f32 0.0, %v348
      %v350 = vpop.f32.mrb[0].mxu0
      %v351 = vadd.f32 0.0, %v350
      %352 = vdwg.mxu0
      %v353 = vld [vmem:[%s4] sm:$0xff]
      %v354 = vld [vmem:[%s4 + $0x8] sm:$0xff]
      %v355 = vld [vmem:[%s4 + $0x10] sm:$0xff]
      %v356 = vld [vmem:[%s4 + $0x18] sm:$0xff]
      %v357 = vld [vmem:[%s4 + $0x20] sm:$0xff]
      %v358 = vld [vmem:[%s4 + $0x28] sm:$0xff]
      %v359 = vpack.c.bf16 %v349, %v345
      %v360 = vld [vmem:[#allocation11] sm:$0xff]
      %v361 = vld [vmem:[#allocation11 + $0x8] sm:$0xf]
      %v362 = vld [vmem:[#allocation11 + $0xc] sm:$0xff]
      %v363 = vld [vmem:[#allocation11 + $0x14] sm:$0xf]
      %v364 = vld [vmem:[#allocation11 + $0x18] sm:$0xff]
      %v365 = vld [vmem:[#allocation11 + $0x20] sm:$0xf]
      %v366 = vld [vmem:[#allocation11 + $0x24] sm:$0xff]
      %v367 = vld [vmem:[#allocation11 + $0x2c] sm:$0xf]
      %v368 = vld [vmem:[#allocation11 + $0x30] sm:$0xff]
      %v369 = vld [vmem:[#allocation11 + $0x38] sm:$0xf]
      %v370 = vld [vmem:[#allocation11 + $0x3c] sm:$0xff]
      %v371 = vld [vmem:[#allocation11 + $0x44] sm:$0xf]
      %v372 = vld [vmem:[#allocation11 + $0x48] sm:$0xff]
      %v373 = vld [vmem:[#allocation11 + $0x50] sm:$0xf]
      %v374 = vld [vmem:[#allocation11 + $0x54] sm:$0xff]
      %v375 = vld [vmem:[#allocation11 + $0x5c] sm:$0xf]
      %v376 = vld [vmem:[#allocation11 + $0x60] sm:$0xff]
      %v377 = vld [vmem:[#allocation11 + $0x68] sm:$0xf]
      %v378 = vld [vmem:[#allocation11 + $0x6c] sm:$0xff]
      %v379 = vld [vmem:[#allocation11 + $0x74] sm:$0xf]
      %v380 = vld [vmem:[#allocation11 + $0x78] sm:$0xff]
      %v381 = vld [vmem:[#allocation11 + $0x80] sm:$0xf]
      %v382 = vld [vmem:[#allocation11 + $0x84] sm:$0xff]
      %v383 = vld [vmem:[#allocation11 + $0x8c] sm:$0xf]
      %v384 = vld [vmem:[#allocation11 + $0x90] sm:$0xff]
      %v385 = vld [vmem:[#allocation11 + $0x98] sm:$0xf]
      %v386 = vld [vmem:[#allocation11 + $0x9c] sm:$0xff]
      %v387 = vld [vmem:[#allocation11 + $0xa4] sm:$0xf]
      %v388 = vld [vmem:[#allocation11 + $0xa8] sm:$0xff]
      %v389 = vld [vmem:[#allocation11 + $0xb0] sm:$0xf]
      %v390 = vld [vmem:[#allocation11 + $0xb4] sm:$0xff]
      %v391 = vld [vmem:[#allocation11 + $0xbc] sm:$0xf]
      %v424 = vunpack.c.l.b16 %v360
      %v425 = vunpack.c.h.b16 %v360
      %v426 = vunpack.c.l.b16 %v361
      %v427 = vunpack.c.l.b16 %v362
      %v428 = vunpack.c.h.b16 %v362
      %v429 = vunpack.c.l.b16 %v363
      %v430 = vunpack.c.l.b16 %v364
      %v431 = vunpack.c.h.b16 %v364
      %v432 = vunpack.c.l.b16 %v365
      %v433 = vunpack.c.l.b16 %v366
      %v434 = vunpack.c.h.b16 %v366
      %v435 = vunpack.c.l.b16 %v367
      %v436 = vunpack.c.l.b16 %v368
      %v437 = vunpack.c.h.b16 %v368
      %v438 = vunpack.c.l.b16 %v369
      %v439 = vunpack.c.l.b16 %v370
      %v440 = vunpack.c.h.b16 %v370
      %v441 = vunpack.c.l.b16 %v371
      %v442 = vunpack.c.l.b16 %v372
      %v443 = vunpack.c.h.b16 %v372
      %v444 = vunpack.c.l.b16 %v373
      %v445 = vunpack.c.l.b16 %v374
      %v446 = vunpack.c.h.b16 %v374
      %v447 = vunpack.c.l.b16 %v375
      %v448 = vunpack.c.l.b16 %v376
      %v449 = vunpack.c.h.b16 %v376
      %v450 = vunpack.c.l.b16 %v377
      %v451 = vunpack.c.l.b16 %v378
      %v452 = vunpack.c.h.b16 %v378
      %v453 = vunpack.c.l.b16 %v379
      %v454 = vunpack.c.l.b16 %v380
      %v455 = vunpack.c.h.b16 %v380
      %v456 = vunpack.c.l.b16 %v381
      %v457 = vunpack.c.l.b16 %v382
      %v458 = vunpack.c.h.b16 %v382
      %v459 = vunpack.c.l.b16 %v383
      %v460 = vunpack.c.l.b16 %v384
      %v461 = vunpack.c.h.b16 %v384
      %v462 = vunpack.c.l.b16 %v385
      %v463 = vunpack.c.l.b16 %v386
      %v464 = vunpack.c.h.b16 %v386
      %v465 = vunpack.c.l.b16 %v387
      %v466 = vunpack.c.l.b16 %v388
      %v467 = vunpack.c.h.b16 %v388
      %v468 = vunpack.c.l.b16 %v389
      %v469 = vunpack.c.l.b16 %v390
      %v470 = vunpack.c.h.b16 %v390
      %v471 = vunpack.c.l.b16 %v391
      %v472 = vpack.c.b16 %v427, %v424
      %v473 = vpack.c.b16 %v428, %v425
      %v474 = vpack.c.b16 %v429, %v426
      %v475 = vpack.c.b16 %v433, %v430
      %v476 = vpack.c.b16 %v434, %v431
      %v477 = vpack.c.b16 %v435, %v432
      %v478 = vpack.c.b16 %v439, %v436
      %v479 = vpack.c.b16 %v440, %v437
      %v480 = vpack.c.b16 %v441, %v438
      %v481 = vpack.c.b16 %v445, %v442
      %v482 = vpack.c.b16 %v446, %v443
      %v483 = vpack.c.b16 %v447, %v444
      %v484 = vpack.c.b16 %v451, %v448
      %v485 = vpack.c.b16 %v452, %v449
      %v486 = vpack.c.b16 %v453, %v450
      %v487 = vpack.c.b16 %v457, %v454
      %v488 = vpack.c.b16 %v458, %v455
      %v489 = vpack.c.b16 %v459, %v456
      %v490 = vpack.c.b16 %v463, %v460
      %v491 = vpack.c.b16 %v464, %v461
      %v492 = vpack.c.b16 %v465, %v462
      %v493 = vpack.c.b16 %v469, %v466
      %v494 = vpack.c.b16 %v470, %v467
      %v495 = vpack.c.b16 %v471, %v468
      %520 = vmatprep.subr.bf16.mxu0 %v473
      %521 = vmatpush1.bf16.msra.mxu0 %v472
      %522 = vmatprep.subr.bf16.mxu0 %v476
      %523 = vmatpush1.bf16.msra.mxu0 %v475
      %524 = vmatprep.subr.bf16.mxu0 %v479
      %525 = vmatpush1.bf16.msra.mxu0 %v478
      %526 = vmatprep.subr.bf16.mxu0 %v482
      %527 = vmatpush1.bf16.msra.mxu0 %v481
      %528 = vmatprep.subr.bf16.mxu0 %v485
      %529 = vmatpush1.bf16.msra.mxu0 %v484
      %530 = vmatprep.subr.bf16.mxu0 %v488
      %531 = vmatpush1.bf16.msra.mxu0 %v487
      %532 = vmatprep.subr.bf16.mxu0 %v491
      %533 = vmatpush1.bf16.msra.mxu0 %v490
      %534 = vmatprep.subr.bf16.mxu0 %v494
      %535 = vmatpush1.bf16.msra.mxu0 %v493
      %536 = vmatprep.subr.bf16.mxu0 0
      %537 = vmatpush1.bf16.msra.mxu0 0
      %538 = vmatprep.subr.bf16.mxu0 0
      %539 = vmatpush1.bf16.msra.mxu0 0
      %540 = vmatprep.subr.bf16.mxu0 0
      %541 = vmatpush1.bf16.msra.mxu0 0
      %542 = vmatprep.subr.bf16.mxu0 0
      %543 = vmatpush1.bf16.msra.mxu0 0
      %544 = vmatprep.subr.bf16.mxu0 0
      %545 = vmatpush1.bf16.msra.mxu0 0
      %546 = vmatprep.subr.bf16.mxu0 0
      %547 = vmatpush1.bf16.msra.mxu0 0
      %548 = vmatprep.subr.bf16.mxu0 0
      %549 = vmatpush1.bf16.msra.mxu0 0
      %550 = vmatprep.subr.bf16.mxu0 0
      %551 = vmatpush1.bf16.msra.mxu0 0
      %552 = vmatprep.mubr.bf16.mxu0 0
      %553 = vmatmul.mubr.bf16.gmra.mrb[0].mxu0 %v359
      %v554 = vpop.f32.mrb[0].mxu0
      %v555 = vadd.f32 0.0, %v554
      %v556 = vpop.f32.mrb[0].mxu0
      %v557 = vadd.f32 0.0, %v556
      %v558 = vpop.f32.mrb[0].mxu0
      %v559 = vadd.f32 0.0, %v558
      %v560 = vpop.f32.mrb[0].mxu0
      %v561 = vadd.f32 0.0, %v560
      %562 = vdwg.mxu0
      %563 = vmatprep.subr.bf16.mxu0 0
      %564 = vmatpush1.bf16.msra.mxu0 %v474
      %565 = vmatprep.subr.bf16.mxu0 0
      %566 = vmatpush1.bf16.msra.mxu0 %v477
      %567 = vmatprep.subr.bf16.mxu0 0
      %568 = vmatpush1.bf16.msra.mxu0 %v480
      %569 = vmatprep.subr.bf16.mxu0 0
      %570 = vmatpush1.bf16.msra.mxu0 %v483
      %571 = vmatprep.subr.bf16.mxu0 0
      %572 = vmatpush1.bf16.msra.mxu0 %v486
      %573 = vmatprep.subr.bf16.mxu0 0
      %574 = vmatpush1.bf16.msra.mxu0 %v489
      %575 = vmatprep.subr.bf16.mxu0 0
      %576 = vmatpush1.bf16.msra.mxu0 %v492
      %577 = vmatprep.subr.bf16.mxu0 0
      %578 = vmatpush1.bf16.msra.mxu0 %v495
      %579 = vmatprep.subr.bf16.mxu0 0
      %580 = vmatpush1.bf16.msra.mxu0 0
      %581 = vmatprep.subr.bf16.mxu0 0
      %582 = vmatpush1.bf16.msra.mxu0 0
      %583 = vmatprep.subr.bf16.mxu0 0
      %584 = vmatpush1.bf16.msra.mxu0 0
      %585 = vmatprep.subr.bf16.mxu0 0
      %586 = vmatpush1.bf16.msra.mxu0 0
      %587 = vmatprep.subr.bf16.mxu0 0
      %588 = vmatpush1.bf16.msra.mxu0 0
      %589 = vmatprep.subr.bf16.mxu0 0
      %590 = vmatpush1.bf16.msra.mxu0 0
      %591 = vmatprep.subr.bf16.mxu0 0
      %592 = vmatpush1.bf16.msra.mxu0 0
      %593 = vmatprep.subr.bf16.mxu0 0
      %594 = vmatpush1.bf16.msra.mxu0 0
      %595 = vmatprep.mubr.bf16.mxu0 0
      %596 = vmatmul.mubr.bf16.gmra.mrb[0].mxu0 %v359
      %v597 = vpop.f32.mrb[0].mxu0
      %v598 = vadd.f32 0.0, %v597
      %v599 = vpop.f32.mrb[0].mxu0
      %v600 = vpop.f32.mrb[0].mxu0
      %v601 = vadd.f32 0.0, %v600
      %v602 = vpop.f32.mrb[0].mxu0
      %603 = vdwg.mxu0
      %v604 = vadd.f32 %v353, %v555
      %v605 = vadd.f32 %v354, %v557
      %v606 = vadd.f32 %v355, %v598
      %v607 = vadd.f32 %v356, %v559
      %v608 = vadd.f32 %v357, %v561
      %v609 = vadd.f32 %v358, %v601
      %v610 = vmul.f32 %v604, 0.5
      %v611 = vmul.f32 %v607, 0.5
      %v612 = vtanh.pop %v610
      %v613 = vtanh.pop %v611
      %v614 = vmul.f32 %v612, 0.5
      %v615 = vmul.f32 %v613, 0.5
      %v616 = vadd.f32 %v614, 0.5
      %v617 = vadd.f32 %v615, 0.5
      %v618 = vmul.f32 %v605, 0.5
      %v619 = vmul.f32 %v608, 0.5
      %v620 = vtanh.pop %v618
      %v621 = vtanh.pop %v619
      %v622 = vmul.f32 %v620, 0.5
      %v623 = vmul.f32 %v621, 0.5
      %v624 = vadd.f32 %v622, 0.5
      %v625 = vadd.f32 %v623, 0.5
      %v626 = vtanh.pop %v606
      %v627 = vtanh.pop %v609
      %v628 = vmul.f32 %v616, %v626
      %v629 = vmul.f32 %v617, %v627
      %v630 = vadd.f32 %v628, %v347
      %v631 = vadd.f32 %v629, %v351
      %v632 = vtanh.pop %v630
      %v633 = vtanh.pop %v631
      %v634 = vmul.f32 %v624, %v632
      %v635 = vmul.f32 %v625, %v633
      %v636 = vstv %s106
      %vm637 = vcmp.eq.s32.totalorder %v103, %v636
      %vm638 = vcmp.eq.s32.totalorder %v104, %v636
      %v639 = vsel %vm637, 1, 0
      %v640 = vsel %vm638, 1, 0
      %641 = vset.pattern.permute.xlu0 0
      %642 = vperm.xlu0 %641, %v639
      %v643 = vpop.permute.xlu0 %642
      %644 = vset.pattern.permute.xlu0 0
      %645 = vperm.xlu0 %644, %v640
      %v646 = vpop.permute.xlu0 %645
      %vm647 = vcmp.eq.s32.totalorder %v643, 1
      %vm648 = vcmp.eq.s32.totalorder %v646, 1
      %v649 = vsel %vm647, %v630, %v113
      %v650 = vsel %vm648, %v631, %v114
      %651 = vst [vmem:[#allocation2] sm:$0xff] %v649
      %652 = vst [vmem:[#allocation2 + $0x8] sm:$0xff] %v650
      %v653 = vsel %vm647, %v634, %v111
      %v654 = vsel %vm648, %v635, %v112
      %655 = vst [vmem:[#allocation14] sm:$0xff] %v653
      %656 = vst [vmem:[#allocation14 + $0x8] sm:$0xff] %v654
    $region58: #{tpu_custom_call.1} parent=1 // loop_footer
      %s110 = sadd.s32 1, %s106
    $region59: #{tpu_custom_call.1} parent=1 // loop_footer_branch
      %105 = sbr.rel target = $region55
    $region60: #{tpu_custom_call.1} parent=1 // loop_exit
      _
    // Predicated region
    $region61: #{tpu_custom_call.1} parent=1 // pred_check
      _
    $region62: #{tpu_custom_call.1} parent=1 // pred_check_branch
      %658 = sbr.rel (0) target = $region64
    $region63: #{tpu_custom_call.1} parent=1 // pred_region
      %s660 = ssub.s32 256, 256
      %661 = vsyncadd [#allocation7], %s660
      %s662 = sshll.u32 [#allocation14], 4
      %s663 = int_to_ptr.vmem [resolvable:$true] %s662
      %668 = dma.vmem_to_hbm [thread:$0]  %s663, 256, %s8, [#allocation7], 128, 128, 8
    $region64: #{tpu_custom_call.1} parent=1 // pred_fallthru
      _
    // Predicated region
    $region65: #{tpu_custom_call.1} parent=1 // pred_check
      _
    $region66: #{tpu_custom_call.1} parent=1 // pred_check_branch
      %670 = sbr.rel (0) target = $region68
    $region67: #{tpu_custom_call.1} parent=1 // pred_region
      %671 = dma.done [#allocation7], 256
    $region68: #{tpu_custom_call.1} parent=1 // pred_fallthru
      _
    %672 = vsyncpa [#allocation6], 1
    %673 = vsyncpa [#allocation9], 1
    %674 = vsyncpa [#allocation12], 1
    %675 = vsyncpa [#allocation7], 1

</llo_original>
